<compile_context>
chip_gen: v7x
topology: tpu7x:2x2x1
jax: 0.10.0
libtpu: 0.0.40
codegen_flags: <defaults>
</compile_context>

<pallas_src>
import math

import jax
import jax.numpy as jnp
from jax import lax
from jax.experimental import pallas as pl
from jax.experimental.pallas import tpu as pltpu


def _round_up(x, m):
    return -(-x // m) * m


def _normalized_linear_kernel(x_ref, w_ref, scale_ref, b_ref, o_ref):
    """One (i, j, k) grid step of out = (X @ W.T) * scale + bias.

    x_ref    : (tm, tk)  bf16 tile of X
    w_ref    : (tn, tk)  bf16 tile of starting_weight (rows = out_features)
    scale_ref: (1,  tn)  f32 per-output-row scale = min(1/||W_row||, 1)
    b_ref    : (1,  tn)  f32 bias tile
    o_ref    : (tm, tn)  f32 output tile (VMEM-resident across the K loop,
                         doubles as the accumulator)
    """
    k = pl.program_id(2)

    @pl.when(k == 0)
    def _():
        o_ref[...] = jnp.zeros_like(o_ref)

    # MXU matmul contracting over in_features of both operands (no W.T /
    # XLU transpose); bf16 operands, f32 accumulation.
    o_ref[...] += lax.dot_general(
        x_ref[...], w_ref[...],
        dimension_numbers=(((1,), (1,)), ((), ())),
        preferred_element_type=jnp.float32,
    )

    @pl.when(k == pl.num_programs(2) - 1)
    def _():
        # Fold row-norm scaling + bias into the O(tm*tn) epilogue.
        o_ref[...] = o_ref[...] * scale_ref[...] + b_ref[...]


def normalized_dot_products(x, starting_weight, bias, *, tm=512, tn=512, tk=512):
    """out = F.linear(x, W * min(1/||W_row||_2, 1), bias) as a Pallas TPU kernel.

    x: (B, in_features), starting_weight: (out, in), bias: (out,).
    """
    B, K = x.shape
    N, K2 = starting_weight.shape
    assert K == K2 and bias.shape == (N,)

    # Per-output-row scale, precomputed once in f32 (depends only on W).
    # rsqrt(0) = inf -> min gives 1, matching torch (zero rows stay zero).
    w_f32 = starting_weight.astype(jnp.float32)
    scale = jnp.minimum(lax.rsqrt(jnp.sum(w_f32 * w_f32, axis=1)), 1.0)

    # Clamp tiles to (8,128)-aligned padded dims.
    tm = min(tm, _round_up(B, 8))
    tn = min(tn, _round_up(N, 128))     # lane-dense output tiles
    tk = min(tk, _round_up(K, 128))
    # v7x megacore: if the batch axis has a single block, keep >= 2 blocks on
    # the out-feature axis (when possible) so both TensorCores get work.
    n_pad128 = _round_up(N, 128)
    if _round_up(B, tm) // tm == 1 and n_pad128 >= 256:
        tn = min(tn, max(128, (n_pad128 // 2) // 128 * 128))

    Bp, Np, Kp = _round_up(B, tm), _round_up(N, tn), _round_up(K, tk)

    def _prep(a, rows, cols, dtype):
        # Cast (if needed) and zero-pad (if needed); zero rows/cols change
        # neither the dot products nor the row norms.
        if a.dtype != dtype:
            a = a.astype(dtype)
        r, c = a.shape
        if (r, c) != (rows, cols):
            a = jnp.pad(a, ((0, rows - r), (0, cols - c)))
        return a

    x_p = _prep(x, Bp, Kp, jnp.bfloat16)
    w_p = _prep(starting_weight, Np, Kp, jnp.bfloat16)
    s_p = _prep(scale.reshape(1, N), 1, Np, jnp.float32)
    b_p = _prep(bias.reshape(1, N), 1, Np, jnp.float32)

    grid = (Bp // tm, Np // tn, Kp // tk)

    out_p = pl.pallas_call(
        _normalized_linear_kernel,
        out_shape=jax.ShapeDtypeStruct((Bp, Np), jnp.float32),
        grid=grid,
        in_specs=[
            pl.BlockSpec((tm, tk), lambda i, j, k: (i, k)),
            pl.BlockSpec((tn, tk), lambda i, j, k: (j, k)),
            pl.BlockSpec((1, tn), lambda i, j, k: (0, j)),
            pl.BlockSpec((1, tn), lambda i, j, k: (0, j)),
        ],
        out_specs=pl.BlockSpec((tm, tn), lambda i, j, k: (i, j)),
        compiler_params=pltpu.CompilerParams(
            dimension_semantics=("parallel", "parallel", "arbitrary"),
        ),
        cost_estimate=pl.CostEstimate(
            flops=2 * Bp * Kp * Np,
            transcendentals=0,
            bytes_accessed=2 * (Bp * Kp + Np * Kp) + 4 * (2 * Np + Bp * Np),
        ),
    )(x_p, w_p, s_p, b_p)

    if (Bp, Np) != (B, N):
        out_p = out_p[:B, :N]
    return out_p


def reference(x, starting_weight, bias):
    norm = jnp.sqrt(jnp.sum(starting_weight * starting_weight, axis=1, keepdims=True))
    w_n = starting_weight * jnp.minimum(1.0 / norm, 1.0)
    return jnp.matmul(x, w_n.T, precision=jax.lax.Precision.HIGHEST) + bias


def _make_case(key, batch, in_features, out_features):
    kx, kw, kb = jax.random.split(key, 3)
    # Mirrors reset_parameters(): kaiming_uniform_(a=sqrt(5)) =>
    # uniform(-1/sqrt(fan_in), 1/sqrt(fan_in)); bias uniform with same bound.
    bound = 1.0 / math.sqrt(in_features)
    w = jax.random.uniform(kw, (out_features, in_features), jnp.float32, -bound, bound)
    # Make some rows have norm > 1 so the normalization branch is exercised.
    w = w.at[: out_features // 2].multiply(20.0)
    b = jax.random.uniform(kb, (out_features,), jnp.float32, -bound, bound)
    x = jax.random.normal(kx, (batch, in_features), jnp.float32)
    return x, w, b


if __name__ == "__main__":
    key = jax.random.PRNGKey(0)
    k1, k2 = jax.random.split(key)

    # Small shapes consistent with the module's forward (a plain linear layer).
    x, w, b = _make_case(k1, batch=8, in_features=32, out_features=16)
    out = jax.block_until_ready(normalized_dot_products(x, w, b))
    ref = reference(x, w, b)
    assert out.shape == (8, 16)
    # bf16 operands / f32 accumulation -> ~1e-2-level agreement with f32 ref.
    assert jnp.allclose(out, ref, atol=5e-2, rtol=2e-2), "mismatch vs reference (small)"

    # Larger case exercising the real tiled grid with a K reduction
    # (grid = (2, 4, 2), parallel batch/out axes, arbitrary K axis).
    x2, w2, b2 = _make_case(k2, batch=256, in_features=512, out_features=512)
    out2 = jax.block_until_ready(
        normalized_dot_products(x2, w2, b2, tm=128, tn=128, tk=256)
    )
    ref2 = reference(x2, w2, b2)
    assert out2.shape == (256, 512)
    assert jnp.allclose(out2, ref2, atol=5e-2, rtol=2e-2), "mismatch vs reference (tiled)"

    # Default large tiles (bf16 operands, 512-tile grid, megacore heuristic).
    out3 = jax.block_until_ready(normalized_dot_products(x2, w2, b2))
    assert jnp.allclose(out3, ref2, atol=5e-2, rtol=2e-2), "mismatch vs reference (large tiles)"

    print("KERNEL_OK")
</pallas_src>

<mosaic_0001>
module attributes {stable_mosaic.version = 11 : i64} {
  func.func @_normalized_linear_kernel(%arg0: i32, %arg1: i32, %arg2: i32, %arg3: memref<8x128xbf16, #tpu.memory_space<vmem>>, %arg4: memref<128x128xbf16, #tpu.memory_space<vmem>>, %arg5: memref<1x128xf32, #tpu.memory_space<vmem>>, %arg6: memref<1x128xf32, #tpu.memory_space<vmem>>, %arg7: memref<8x128xf32, #tpu.memory_space<vmem>>) attributes {dimension_semantics = [#tpu.dimension_semantics<parallel>, #tpu.dimension_semantics<parallel>, #tpu.dimension_semantics<arbitrary>], iteration_bounds = array<i64: 1, 1, 1>, scalar_prefetch = 0 : i64, scratch_operands = 0 : i64, tpu.core_type = #tpu.core_type<tc>, window_params = [{transform_indices = @transform_0, window_bounds = array<i64: 8, 128>}, {transform_indices = @transform_1, window_bounds = array<i64: 128, 128>}, {transform_indices = @transform_2, window_bounds = array<i64: 1, 128>}, {transform_indices = @transform_3, window_bounds = array<i64: 1, 128>}, {transform_indices = @transform_4, window_bounds = array<i64: 8, 128>}]} {
    %c0_i32 = arith.constant 0 : i32
    %0 = arith.cmpi eq, %arg2, %c0_i32 : i32
    %1 = arith.extui %0 : i1 to i32
    %c0_i32_0 = arith.constant 0 : i32
    %2 = arith.cmpi ne, %1, %c0_i32_0 : i32
    scf.if %2 {
      %cst_10 = arith.constant 0.000000e+00 : f32
      %12 = vector.broadcast %cst_10 : f32 to vector<8x128xf32>
      %c0_11 = arith.constant 0 : index
      %c0_12 = arith.constant 0 : index
      %13 = vector.load %arg7[%c0_11, %c0_12] : memref<8x128xf32, #tpu.memory_space<vmem>>, vector<8x128xf32>
      tpu.vector_store %arg7[%c0_11, %c0_12], %12 {strides = array<i32>} : memref<8x128xf32, #tpu.memory_space<vmem>>, vector<8x128xf32>,
    } else {
    }
    %c0 = arith.constant 0 : index
    %c0_1 = arith.constant 0 : index
    %3 = vector.load %arg7[%c0, %c0_1] : memref<8x128xf32, #tpu.memory_space<vmem>>, vector<8x128xf32>
    %c0_2 = arith.constant 0 : index
    %c0_3 = arith.constant 0 : index
    %4 = vector.load %arg3[%c0_2, %c0_3] : memref<8x128xbf16, #tpu.memory_space<vmem>>, vector<8x128xbf16>
    %c0_4 = arith.constant 0 : index
    %c0_5 = arith.constant 0 : index
    %5 = vector.load %arg4[%c0_4, %c0_5] : memref<128x128xbf16, #tpu.memory_space<vmem>>, vector<128x128xbf16>
    %cst = arith.constant dense<0.000000e+00> : vector<8x128xf32>
    %6 = tpu.matmul %4, %5, %cst {dimension_numbers = #tpu.dot_dimension_numbers<[1], [1], [0], [0], [0, 0, 1, 0], [], []>} : vector<8x128xbf16>, vector<128x128xbf16>, vector<8x128xf32> -> vector<8x128xf32>
    %7 = arith.addf %3, %6 : vector<8x128xf32>
    %c0_6 = arith.constant 0 : index
    %c0_7 = arith.constant 0 : index
    %8 = vector.load %arg7[%c0_6, %c0_7] : memref<8x128xf32, #tpu.memory_space<vmem>>, vector<8x128xf32>
    tpu.vector_store %arg7[%c0_6, %c0_7], %7 {strides = array<i32>} : memref<8x128xf32, #tpu.memory_space<vmem>>, vector<8x128xf32>,
    %c0_i32_8 = arith.constant 0 : i32
    %9 = arith.cmpi eq, %arg2, %c0_i32_8 : i32
    %10 = arith.extui %9 : i1 to i32
    %c0_i32_9 = arith.constant 0 : i32
    %11 = arith.cmpi ne, %10, %c0_i32_9 : i32
    scf.if %11 {
      %c0_10 = arith.constant 0 : index
      %c0_11 = arith.constant 0 : index
      %12 = vector.load %arg7[%c0_10, %c0_11] : memref<8x128xf32, #tpu.memory_space<vmem>>, vector<8x128xf32>
      %c0_12 = arith.constant 0 : index
      %c0_13 = arith.constant 0 : index
      %13 = vector.load %arg5[%c0_12, %c0_13] : memref<1x128xf32, #tpu.memory_space<vmem>>, vector<1x128xf32>
      %14 = vector.broadcast %13 : vector<1x128xf32> to vector<8x128xf32>
      %15 = arith.mulf %12, %14 : vector<8x128xf32>
      %c0_14 = arith.constant 0 : index
      %c0_15 = arith.constant 0 : index
      %16 = vector.load %arg6[%c0_14, %c0_15] : memref<1x128xf32, #tpu.memory_space<vmem>>, vector<1x128xf32>
      %17 = vector.broadcast %16 : vector<1x128xf32> to vector<8x128xf32>
      %18 = arith.addf %15, %17 : vector<8x128xf32>
      %c0_16 = arith.constant 0 : index
      %c0_17 = arith.constant 0 : index
      %19 = vector.load %arg7[%c0_16, %c0_17] : memref<8x128xf32, #tpu.memory_space<vmem>>, vector<8x128xf32>
      tpu.vector_store %arg7[%c0_16, %c0_17], %18 {strides = array<i32>} : memref<8x128xf32, #tpu.memory_space<vmem>>, vector<8x128xf32>,
    } else {
    }
    return
  }
  func.func @transform_0(%arg0: i32, %arg1: i32, %arg2: i32) -> (i32, i32) {
    %c0_i32 = arith.constant 0 : i32
    return %arg0, %arg2 : i32, i32
  }
  func.func @transform_1(%arg0: i32, %arg1: i32, %arg2: i32) -> (i32, i32) {
    %c0_i32 = arith.constant 0 : i32
    return %arg1, %arg2 : i32, i32
  }
  func.func @transform_2(%arg0: i32, %arg1: i32, %arg2: i32) -> (i32, i32) {
    %c0_i32 = arith.constant 0 : i32
    %c0_i32_0 = arith.constant 0 : i32
    return %c0_i32, %arg1 : i32, i32
  }
  func.func @transform_3(%arg0: i32, %arg1: i32, %arg2: i32) -> (i32, i32) {
    %c0_i32 = arith.constant 0 : i32
    %c0_i32_0 = arith.constant 0 : i32
    return %c0_i32, %arg1 : i32, i32
  }
  func.func @transform_4(%arg0: i32, %arg1: i32, %arg2: i32) -> (i32, i32) {
    %c0_i32 = arith.constant 0 : i32
    return %arg0, %arg1 : i32, i32
  }
}

</mosaic_0001>

<llo_original>
// kernel: tpu_custom_call.1
$region0: #{tpu_custom_call.1}
  #allocation0 [shape = 'u32[]', space=smem, size = 0x4, offset = 0x4, fixed_abs, tag = 'smem constant byte address 0x4 - core index']
  #allocation1 [shape = 'u32[144,128]{1,0:T(1,128)}', space=vmem, size = 0x12000, scoped, tag = 'internal scratch']
  %s0 = inlined_call_operand.hbm [shape: bf16[8,128], index: 0, kind: input, shape index: {}]
  %s1 = inlined_call_operand.hbm [shape: bf16[128,128], index: 1, kind: input, shape index: {}]
  %s2 = inlined_call_operand.vmem [shape: f32[1,128], index: 2, kind: input, shape index: {}]
  %s3 = inlined_call_operand.vmem [shape: f32[1,128], index: 3, kind: input, shape index: {}]
  %s4 = inlined_call_operand.hbm [shape: f32[8,128], index: 4, kind: output, shape index: {}]
  %s5 = sld [smem:[#allocation0]]
  $region42: #{tpu_custom_call.1} parent=0
    _
  %s7 = ssub.s32 1, %s5
  %s8 = scalar_select 0, %s7, %s5
  $region1: #{tpu_custom_call.1} parent=0
    #allocation2 [shape = 'u8[2048]{0}', space=vmem, size = 0x800, scoped, tag = 'input window, operand 0, single buffered']
    #allocation3 [shape = 's32[1]{0}', space=sflag, size = 0x4, scoped, tag = 'scoped memory for tpu_custom_call.1']
    #allocation4 [shape = 's32[1]{0}', space=sflag, size = 0x4, scoped, tag = 'scoped memory for tpu_custom_call.1']
    #allocation5 [shape = 'u8[32768]{0}', space=vmem, size = 0x8000, scoped, tag = 'input window, operand 1, single buffered']
    #allocation6 [shape = 's32[1]{0}', space=sflag, size = 0x4, scoped, tag = 'scoped memory for tpu_custom_call.1']
    #allocation7 [shape = 'u8[4096]{0}', space=vmem, size = 0x1000, scoped, tag = 'output window, operand 0, single buffered']
    %9 = vsyncpa [#allocation3], 0
    %10 = vsyncpa [#allocation6], 0
    %11 = vsyncpa [#allocation4], 0
    // Predicated region
    $region2: #{tpu_custom_call.1} parent=1 // pred_check
      _
    $region3: #{tpu_custom_call.1} parent=1 // pred_check_branch
      %13 = sbr.rel (0) target = $region5
    $region4: #{tpu_custom_call.1} parent=1 // pred_region
      %s15 = ssub.s32 64, 64
      %16 = vsyncadd [#allocation3], %s15
      %s18 = sshll.u32 [#allocation2], 4
      %s19 = int_to_ptr.vmem [resolvable:$true] %s18
      %21 = dma.hbm_to_vmem [thread:$0]  %s0, 64, %s19, [#allocation3]
    $region5: #{tpu_custom_call.1} parent=1 // pred_fallthru
      _
    // Predicated region
    $region6: #{tpu_custom_call.1} parent=1 // pred_check
      _
    $region7: #{tpu_custom_call.1} parent=1 // pred_check_branch
      %23 = sbr.rel (0) target = $region9
    $region8: #{tpu_custom_call.1} parent=1 // pred_region
      %s25 = ssub.s32 1024, 1024
      %26 = vsyncadd [#allocation6], %s25
      %s27 = sshll.u32 [#allocation5], 4
      %s28 = int_to_ptr.vmem [resolvable:$true] %s27
      %33 = dma.hbm_to_vmem [thread:$0]  %s1, 1024, %s28, [#allocation6], 64, 64, 4
    $region9: #{tpu_custom_call.1} parent=1 // pred_fallthru
      _
    // Predicated region
    $region10: #{tpu_custom_call.1} parent=1 // pred_check
      _
    $region11: #{tpu_custom_call.1} parent=1 // pred_check_branch
      %35 = sbr.rel (0) target = $region13
    $region12: #{tpu_custom_call.1} parent=1 // pred_region
      _
    $region13: #{tpu_custom_call.1} parent=1 // pred_fallthru
      _
    // Predicated region
    $region14: #{tpu_custom_call.1} parent=1 // pred_check
      _
    $region15: #{tpu_custom_call.1} parent=1 // pred_check_branch
      %37 = sbr.rel (0) target = $region17
    $region16: #{tpu_custom_call.1} parent=1 // pred_region
      _
    $region17: #{tpu_custom_call.1} parent=1 // pred_fallthru
      _
    // Predicated region
    $region18: #{tpu_custom_call.1} parent=1 // pred_check
      _
    $region19: #{tpu_custom_call.1} parent=1 // pred_check_branch
      %39 = sbr.rel (0) target = $region21
    $region20: #{tpu_custom_call.1} parent=1 // pred_region
      %40 = dma.done [#allocation3], 64
    $region21: #{tpu_custom_call.1} parent=1 // pred_fallthru
      _
    // Predicated region
    $region22: #{tpu_custom_call.1} parent=1 // pred_check
      _
    $region23: #{tpu_custom_call.1} parent=1 // pred_check_branch
      %42 = sbr.rel (0) target = $region25
    $region24: #{tpu_custom_call.1} parent=1 // pred_region
      %43 = dma.done [#allocation6], 1024
    $region25: #{tpu_custom_call.1} parent=1 // pred_fallthru
      _
    %p45 = scmp.eq.s32.totalorder 0, 0
    // Predicated region
    $region26: #{tpu_custom_call.1} parent=1 // pred_check
      %p46 = pneg %p45
    $region27: #{tpu_custom_call.1} parent=1 // pred_check_branch
      %48 = sbr.rel (%p46) target = $region29
    $region28: #{tpu_custom_call.1} parent=1 // pred_region
      %49 = vst [vmem:[#allocation7] sm:$0xff] 0.0
    $region29: #{tpu_custom_call.1} parent=1 // pred_fallthru
      _
    %v50 = vld [vmem:[#allocation7] sm:$0xff]
    %v51 = vld [vmem:[#allocation2] sm:$0xf]
    %v52 = vld [vmem:[#allocation5] sm:$0xf]
    %v53 = vld [vmem:[#allocation5 + $0x4] sm:$0xf]
    %v54 = vld [vmem:[#allocation5 + $0x8] sm:$0xf]
    %v55 = vld [vmem:[#allocation5 + $0xc] sm:$0xf]
    %v56 = vld [vmem:[#allocation5 + $0x10] sm:$0xf]
    %v57 = vld [vmem:[#allocation5 + $0x14] sm:$0xf]
    %v58 = vld [vmem:[#allocation5 + $0x18] sm:$0xf]
    %v59 = vld [vmem:[#allocation5 + $0x1c] sm:$0xf]
    %v60 = vld [vmem:[#allocation5 + $0x20] sm:$0xf]
    %v61 = vld [vmem:[#allocation5 + $0x24] sm:$0xf]
    %v62 = vld [vmem:[#allocation5 + $0x28] sm:$0xf]
    %v63 = vld [vmem:[#allocation5 + $0x2c] sm:$0xf]
    %v64 = vld [vmem:[#allocation5 + $0x30] sm:$0xf]
    %v65 = vld [vmem:[#allocation5 + $0x34] sm:$0xf]
    %v66 = vld [vmem:[#allocation5 + $0x38] sm:$0xf]
    %v67 = vld [vmem:[#allocation5 + $0x3c] sm:$0xf]
    %v84 = vunpack.c.l.b16 %v52
    %v85 = vunpack.c.l.b16 %v53
    %v86 = vunpack.c.l.b16 %v54
    %v87 = vunpack.c.l.b16 %v55
    %v88 = vunpack.c.l.b16 %v56
    %v89 = vunpack.c.l.b16 %v57
    %v90 = vunpack.c.l.b16 %v58
    %v91 = vunpack.c.l.b16 %v59
    %v92 = vunpack.c.l.b16 %v60
    %v93 = vunpack.c.l.b16 %v61
    %v94 = vunpack.c.l.b16 %v62
    %v95 = vunpack.c.l.b16 %v63
    %v96 = vunpack.c.l.b16 %v64
    %v97 = vunpack.c.l.b16 %v65
    %v98 = vunpack.c.l.b16 %v66
    %v99 = vunpack.c.l.b16 %v67
    %v100 = vpack.c.b16 %v85, %v84
    %v101 = vpack.c.b16 %v87, %v86
    %v102 = vpack.c.b16 %v89, %v88
    %v103 = vpack.c.b16 %v91, %v90
    %v104 = vpack.c.b16 %v93, %v92
    %v105 = vpack.c.b16 %v95, %v94
    %v106 = vpack.c.b16 %v97, %v96
    %v107 = vpack.c.b16 %v99, %v98
    %116 = vmatprep.subr.bf16.mxu0 0
    %117 = vmatpush1.bf16.xpose.msra.mxu0 %v100
    %118 = vmatprep.subr.bf16.mxu0 0
    %119 = vmatpush1.bf16.xpose.msra.mxu0 %v101
    %120 = vmatprep.subr.bf16.mxu0 0
    %121 = vmatpush1.bf16.xpose.msra.mxu0 %v102
    %122 = vmatprep.subr.bf16.mxu0 0
    %123 = vmatpush1.bf16.xpose.msra.mxu0 %v103
    %124 = vmatprep.subr.bf16.mxu0 0
    %125 = vmatpush1.bf16.xpose.msra.mxu0 %v104
    %126 = vmatprep.subr.bf16.mxu0 0
    %127 = vmatpush1.bf16.xpose.msra.mxu0 %v105
    %128 = vmatprep.subr.bf16.mxu0 0
    %129 = vmatpush1.bf16.xpose.msra.mxu0 %v106
    %130 = vmatprep.subr.bf16.mxu0 0
    %131 = vmatpush1.bf16.xpose.msra.mxu0 %v107
    %132 = vmatprep.subr.bf16.mxu0 0
    %133 = vmatpush1.bf16.xpose.msra.mxu0 0
    %134 = vmatprep.subr.bf16.mxu0 0
    %135 = vmatpush1.bf16.xpose.msra.mxu0 0
    %136 = vmatprep.subr.bf16.mxu0 0
    %137 = vmatpush1.bf16.xpose.msra.mxu0 0
    %138 = vmatprep.subr.bf16.mxu0 0
    %139 = vmatpush1.bf16.xpose.msra.mxu0 0
    %140 = vmatprep.subr.bf16.mxu0 0
    %141 = vmatpush1.bf16.xpose.msra.mxu0 0
    %142 = vmatprep.subr.bf16.mxu0 0
    %143 = vmatpush1.bf16.xpose.msra.mxu0 0
    %144 = vmatprep.subr.bf16.mxu0 0
    %145 = vmatpush1.bf16.xpose.msra.mxu0 0
    %146 = vmatprep.subr.bf16.mxu0 0
    %147 = vmatpush1.bf16.xpose.msra.mxu0 0
    %148 = vmatprep.mubr.bf16.mxu0 0
    %149 = vmatmul.mubr.bf16.gmra.mrb[0].mxu0 %v51
    %v150 = vpop.f32.mrb[0].mxu0
    %v151 = vadd.f32 0.0, %v150
    %v152 = vpop.f32.mrb[0].mxu0
    %v153 = vpop.f32.mrb[0].mxu0
    %v154 = vpop.f32.mrb[0].mxu0
    %155 = vdwg.mxu0
    %v156 = vadd.f32 %v50, %v151
    %157 = vst [vmem:[#allocation7] sm:$0xff] %v156
    // Predicated region
    $region30: #{tpu_custom_call.1} parent=1 // pred_check
      %p158 = pneg %p45
    $region31: #{tpu_custom_call.1} parent=1 // pred_check_branch
      %160 = sbr.rel (%p158) target = $region33
    $region32: #{tpu_custom_call.1} parent=1 // pred_region
      %v161 = vld [vmem:[#allocation7] sm:$0xff]
      %v162 = vld [vmem:[%s2] sm:$0x1]
      %v164 = vlaneseq
      %v165 = vshrl.u32 %v164, 7
      %v166 = vsub.s32 0, %v165
      %v167 = vrot.slane %v162, %v166
      %v169 = vmul.f32 %v161, %v167
      %v170 = vld [vmem:[%s3] sm:$0x1]
      %v172 = vlaneseq
      %v173 = vshrl.u32 %v172, 7
      %v174 = vsub.s32 0, %v173
      %v175 = vrot.slane %v170, %v174
      %v177 = vadd.f32 %v169, %v175
      %178 = vst [vmem:[#allocation7] sm:$0xff] %v177
    $region33: #{tpu_custom_call.1} parent=1 // pred_fallthru
      _
    // Predicated region
    $region34: #{tpu_custom_call.1} parent=1 // pred_check
      _
    $region35: #{tpu_custom_call.1} parent=1 // pred_check_branch
      %180 = sbr.rel (0) target = $region37
    $region36: #{tpu_custom_call.1} parent=1 // pred_region
      %s182 = ssub.s32 128, 128
      %183 = vsyncadd [#allocation4], %s182
      %s185 = sshll.u32 [#allocation7], 4
      %s186 = int_to_ptr.vmem [resolvable:$true] %s185
      %188 = dma.vmem_to_hbm [thread:$0]  %s186, 128, %s4, [#allocation4]
    $region37: #{tpu_custom_call.1} parent=1 // pred_fallthru
      _
    // Predicated region
    $region38: #{tpu_custom_call.1} parent=1 // pred_check
      _
    $region39: #{tpu_custom_call.1} parent=1 // pred_check_branch
      %190 = sbr.rel (0) target = $region41
    $region40: #{tpu_custom_call.1} parent=1 // pred_region
      %191 = dma.done [#allocation4], 128
    $region41: #{tpu_custom_call.1} parent=1 // pred_fallthru
      _
    %192 = vsyncpa [#allocation3], 1
    %193 = vsyncpa [#allocation6], 1
    %194 = vsyncpa [#allocation4], 1

</llo_original>
